<compile_context>
chip_gen: v6e
topology: v6e:2x2x1
jax: 0.10.0
libtpu: 0.0.40
codegen_flags: <defaults>
</compile_context>

<pallas_src>
import jax
import jax.numpy as jnp
from jax.experimental import pallas as pl
from jax.experimental.pallas import tpu as pltpu

INPUT_DIM = 1
HIDDEN_DIM = 10
K = 16
LANES = 128

# ----- f32 vector slab: one (8, 128) tile -----
ROW_W1X = 0      # fc1_x weight (row vector, in_dim == 1), lanes 0:H
ROW_B1X = 1      # fc1_x bias,  lanes 0:H
ROW_B2X = 2      # fc2_x bias,  lanes 0:H
ROW_B1C = 3      # [b1_mean | b1_sigma | b1_weight], lanes 0:3H
ROW_B2C = 4      # [b2_mean | b2_sigma | b2_weight], lanes 0:3K
VEC_ROWS = 8

# ----- bf16 weight slab: three 128-row (contraction-padded) sections -----
SEC_W2X = 0 * LANES      # (128, 128): fc2_x, rows 0:H / lanes 0:H used
SEC_W1C = 1 * LANES      # (128, 128): [w1_mean | w1_sigma | w1_weight]
SEC_W2D = 2 * LANES      # (128, 128): block-diag [w2_mean; w2_sigma; w2_weight]
WGT_ROWS = 3 * LANES


def toynet_kernel(x_ref, vec_ref, wgt_ref, out_ref):
    # (1, 128) full-lane rows of the f32 vector slab.  Zero padding past the
    # logical widths also zero-masks the padded activation lanes.
    w1x = vec_ref[ROW_W1X:ROW_W1X + 1, :]
    b1x = vec_ref[ROW_B1X:ROW_B1X + 1, :]
    b2x = vec_ref[ROW_B2X:ROW_B2X + 1, :]
    b1c = vec_ref[ROW_B1C:ROW_B1C + 1, :]
    b2c = vec_ref[ROW_B2C:ROW_B2C + 1, :]

    # Tile-aligned (128, 128) bf16 weight sections (zero padded) -> no relayouts.
    w2x = wgt_ref[SEC_W2X:SEC_W2X + LANES, :]
    w1c = wgt_ref[SEC_W1C:SEC_W1C + LANES, :]
    w2d = wgt_ref[SEC_W2D:SEC_W2D + LANES, :]

    x = x_ref[...]                                            # (tb, 1) f32
    bf = jnp.bfloat16
    f32 = jnp.float32

    # ---- feature_net ----
    # fc1_x has in_dim == 1 -> broadcasted VPU outer product, exact f32.
    h = jnp.maximum(x * w1x + b1x, 0.0)                       # (tb, 128), lanes >= H are 0
    h = jnp.maximum(
        jnp.dot(h.astype(bf), w2x, preferred_element_type=f32) + b2x, 0.0)

    # ---- noise_net: fused first layers of mean / sigma / weight branches ----
    z = jnp.maximum(
        jnp.dot(h.astype(bf), w1c, preferred_element_type=f32) + b1c, 0.0)

    # ---- noise_net: fused block-diagonal second layers ----
    # lanes [0:K) = means, [K:2K) = log_sigma2s, [2K:3K) = weight logits, rest 0
    out = jnp.dot(z.astype(bf), w2d, preferred_element_type=f32) + b2c

    # ---- softmax over the logit lanes, kept 128-lane dense ----
    # Lane mask instead of lane-slice + concat; exact divide for normalization.
    lane = jax.lax.broadcasted_iota(jnp.int32, out.shape, 1)
    is_logit = (lane >= 2 * K) & (lane < 3 * K)
    masked = jnp.where(is_logit, out, -jnp.inf)
    m = jnp.max(masked, axis=-1, keepdims=True)
    e = jnp.exp(masked - m)                                   # exactly 0 off the logit lanes
    denom = jnp.sum(e, axis=-1, keepdims=True)
    weights = e / denom                                       # exact: sums to 1

    # single unmasked lane-dense store
    out_ref[...] = jnp.where(is_logit, weights, out)


def pack_params(p):
    """Pack ToyNet params into (vec_slab (8,128) f32, wgt_slab (384,128) bf16)."""
    H = HIDDEN_DIM
    vec = jnp.zeros((VEC_ROWS, LANES), jnp.float32)
    vec = vec.at[ROW_W1X, 0:H].set(p["w1x"][0])
    vec = vec.at[ROW_B1X, 0:H].set(p["b1x"][0])
    vec = vec.at[ROW_B2X, 0:H].set(p["b2x"][0])
    vec = vec.at[ROW_B1C, 0:3 * H].set(
        jnp.concatenate([p["b1m"], p["b1s"], p["b1w"]], axis=1)[0])
    vec = vec.at[ROW_B2C, 0:3 * K].set(
        jnp.concatenate([p["b2m"], p["b2s"], p["b2w"]], axis=1)[0])

    wgt = jnp.zeros((WGT_ROWS, LANES), jnp.float32)
    # fc2_x: contraction rows 0:H, output lanes 0:H
    wgt = wgt.at[SEC_W2X:SEC_W2X + H, 0:H].set(p["w2x"])
    # fused fc1_{mean,sigma,weight}: rows 0:H, lanes 0:3H
    wgt = wgt.at[SEC_W1C:SEC_W1C + H, 0:3 * H].set(
        jnp.concatenate([p["w1m"], p["w1s"], p["w1w"]], axis=1))
    # block-diagonal fused fc2_{mean,sigma,weight}: off-diagonal blocks stay 0
    wgt = wgt.at[SEC_W2D + 0 * H:SEC_W2D + 1 * H, 0 * K:1 * K].set(p["w2m"])
    wgt = wgt.at[SEC_W2D + 1 * H:SEC_W2D + 2 * H, 1 * K:2 * K].set(p["w2s"])
    wgt = wgt.at[SEC_W2D + 2 * H:SEC_W2D + 3 * H, 2 * K:3 * K].set(p["w2w"])
    return vec, wgt.astype(jnp.bfloat16)


def _round_up(v, m):
    return ((v + m - 1) // m) * m


def toynet_forward(x, vec_slab, wgt_slab, *, batch_tile=2048):
    """x: (B, 1) f32.  Returns (means, log_sigma2s, weights), each (B, K)."""
    B = x.shape[0]
    tb = min(batch_tile, _round_up(max(B, 8), 8))
    if B >= 512:
        # keep >= 2 grid steps so the ("parallel",) axis can use both v7x TCs
        tb = min(tb, _round_up(pl.cdiv(B, 2), 8))
    tb = max(8, tb)
    bp = _round_up(B, tb)
    xp = x if bp == B else jnp.pad(x, ((0, bp - B), (0, 0)))

    H = HIDDEN_DIM
    cost = pl.CostEstimate(
        flops=2 * bp * (H * H + H * 3 * H + 3 * H * 3 * K),
        transcendentals=bp * K,
        bytes_accessed=bp * (INPUT_DIM + LANES) * 4
        + VEC_ROWS * LANES * 4
        + WGT_ROWS * LANES * 2,
    )

    out = pl.pallas_call(
        toynet_kernel,
        out_shape=jax.ShapeDtypeStruct((bp, LANES), jnp.float32),
        grid=(bp // tb,),
        in_specs=[
            pl.BlockSpec((tb, INPUT_DIM), lambda i: (i, 0)),
            pl.BlockSpec((VEC_ROWS, LANES), lambda i: (0, 0)),
            pl.BlockSpec((WGT_ROWS, LANES), lambda i: (0, 0)),
        ],
        out_specs=pl.BlockSpec((tb, LANES), lambda i: (i, 0)),
        compiler_params=pltpu.CompilerParams(
            dimension_semantics=("parallel",),
            vmem_limit_bytes=64 * 1024 * 1024,
        ),
        cost_estimate=cost,
    )(xp, vec_slab, wgt_slab)

    out = out[:B]
    return out[:, 0:K], out[:, K:2 * K], out[:, 2 * K:3 * K]


def init_params(key):
    """Deterministic synthetic initialization (uniform, torch-default-like scale)."""
    def linear(key, fan_in, fan_out):
        kw, kb = jax.random.split(key)
        bound = 1.0 / (fan_in ** 0.5)
        w = jax.random.uniform(kw, (fan_in, fan_out), jnp.float32, -bound, bound)
        b = jax.random.uniform(kb, (1, fan_out), jnp.float32, -bound, bound)
        return w, b

    keys = jax.random.split(key, 8)
    p = {}
    p["w1x"], p["b1x"] = linear(keys[0], INPUT_DIM, HIDDEN_DIM)
    p["w2x"], p["b2x"] = linear(keys[1], HIDDEN_DIM, HIDDEN_DIM)
    p["w1m"], p["b1m"] = linear(keys[2], HIDDEN_DIM, HIDDEN_DIM)
    p["w2m"], p["b2m"] = linear(keys[3], HIDDEN_DIM, K)
    p["w1s"], p["b1s"] = linear(keys[4], HIDDEN_DIM, HIDDEN_DIM)
    p["w2s"], p["b2s"] = linear(keys[5], HIDDEN_DIM, K)
    p["w1w"], p["b1w"] = linear(keys[6], HIDDEN_DIM, HIDDEN_DIM)
    p["w2w"], p["b2w"] = linear(keys[7], HIDDEN_DIM, K)
    return p


def reference_forward(x, p, matmul_dtype=jnp.float32):
    """Pure-JAX ToyNet.forward(x, y).  matmul_dtype=bf16 mirrors kernel numerics."""
    def dot(a, w):
        return jnp.dot(a.astype(matmul_dtype), w.astype(matmul_dtype),
                       preferred_element_type=jnp.float32)

    h = jnp.maximum(x @ p["w1x"] + p["b1x"], 0.0)   # fc1_x stays f32 (like kernel)
    h = jnp.maximum(dot(h, p["w2x"]) + p["b2x"], 0.0)
    m = jnp.maximum(dot(h, p["w1m"]) + p["b1m"], 0.0)
    means = dot(m, p["w2m"]) + p["b2m"]
    s = jnp.maximum(dot(h, p["w1s"]) + p["b1s"], 0.0)
    log_sigma2s = dot(s, p["w2s"]) + p["b2s"]
    w = jnp.maximum(dot(h, p["w1w"]) + p["b1w"], 0.0)
    logits = dot(w, p["w2w"]) + p["b2w"]
    weights = jax.nn.softmax(logits, axis=1)
    return means, log_sigma2s, weights


# TODO(synk): ToyPredictorNet and create_model_dirs are not used by ToyNet.forward
# (it only runs feature_net + noise_net), so they are intentionally not ported.

if __name__ == "__main__":
    key = jax.random.PRNGKey(0)
    kp, kx, ky = jax.random.split(key, 3)

    params = init_params(kp)
    vec_slab, wgt_slab = pack_params(params)

    B = 8
    x = jax.random.normal(kx, (B, INPUT_DIM), jnp.float32)
    y = jax.random.normal(ky, (B,), jnp.float32)  # unused by forward(), mirrors torch signature

    means, log_sigma2s, weights = toynet_forward(x, vec_slab, wgt_slab)
    jax.block_until_ready((means, log_sigma2s, weights))

    # Tight check against a reference matching the kernel's bf16-matmul numerics.
    bm, bs, bw = reference_forward(x, params, matmul_dtype=jnp.bfloat16)
    assert jnp.allclose(means, bm, atol=1e-2)
    assert jnp.allclose(log_sigma2s, bs, atol=1e-2)
    assert jnp.allclose(weights, bw, atol=1e-2)

    # Loose check against the exact f32 module semantics (bf16 operand rounding).
    fm, fs, fw = reference_forward(x, params, matmul_dtype=jnp.float32)
    assert jnp.allclose(means, fm, atol=1e-1)
    assert jnp.allclose(log_sigma2s, fs, atol=1e-1)
    assert jnp.allclose(weights, fw, atol=1e-1)

    # Exact normalization invariant (exact divide in the kernel softmax).
    assert jnp.allclose(jnp.sum(weights, axis=-1), 1.0, atol=1e-4)

    print("KERNEL_OK")
</pallas_src>

<mosaic_0001>
module attributes {stable_mosaic.version = 11 : i64} {
  func.func @toynet_kernel(%arg0: i32, %arg1: memref<8x1xf32, #tpu.memory_space<vmem>>, %arg2: memref<8x128xf32, #tpu.memory_space<vmem>>, %arg3: memref<384x128xbf16, #tpu.memory_space<vmem>>, %arg4: memref<8x128xf32, #tpu.memory_space<vmem>>) attributes {dimension_semantics = [#tpu.dimension_semantics<parallel>], iteration_bounds = array<i64: 1>, scalar_prefetch = 0 : i64, scratch_operands = 0 : i64, tpu.core_type = #tpu.core_type<tc>, window_params = [{transform_indices = @transform_0, window_bounds = array<i64: 8, 1>}, {pipeline_mode = #tpu.pipeline_mode<synchronous>, transform_indices = @transform_1, window_bounds = array<i64: 8, 128>}, {pipeline_mode = #tpu.pipeline_mode<synchronous>, transform_indices = @transform_2, window_bounds = array<i64: 384, 128>}, {transform_indices = @transform_3, window_bounds = array<i64: 8, 128>}]} {
    %c0 = arith.constant 0 : index
    %c0_0 = arith.constant 0 : index
    %0 = vector.load %arg2[%c0, %c0_0] : memref<8x128xf32, #tpu.memory_space<vmem>>, vector<1x128xf32>
    %c1 = arith.constant 1 : index
    %c0_1 = arith.constant 0 : index
    %1 = vector.load %arg2[%c1, %c0_1] : memref<8x128xf32, #tpu.memory_space<vmem>>, vector<1x128xf32>
    %c2 = arith.constant 2 : index
    %c0_2 = arith.constant 0 : index
    %2 = vector.load %arg2[%c2, %c0_2] : memref<8x128xf32, #tpu.memory_space<vmem>>, vector<1x128xf32>
    %c3 = arith.constant 3 : index
    %c0_3 = arith.constant 0 : index
    %3 = vector.load %arg2[%c3, %c0_3] : memref<8x128xf32, #tpu.memory_space<vmem>>, vector<1x128xf32>
    %c4 = arith.constant 4 : index
    %c0_4 = arith.constant 0 : index
    %4 = vector.load %arg2[%c4, %c0_4] : memref<8x128xf32, #tpu.memory_space<vmem>>, vector<1x128xf32>
    %c0_5 = arith.constant 0 : index
    %c0_6 = arith.constant 0 : index
    %5 = vector.load %arg3[%c0_5, %c0_6] : memref<384x128xbf16, #tpu.memory_space<vmem>>, vector<128x128xbf16>
    %c128 = arith.constant 128 : index
    %c0_7 = arith.constant 0 : index
    %6 = vector.load %arg3[%c128, %c0_7] : memref<384x128xbf16, #tpu.memory_space<vmem>>, vector<128x128xbf16>
    %c256 = arith.constant 256 : index
    %c0_8 = arith.constant 0 : index
    %7 = vector.load %arg3[%c256, %c0_8] : memref<384x128xbf16, #tpu.memory_space<vmem>>, vector<128x128xbf16>
    %c0_9 = arith.constant 0 : index
    %c0_10 = arith.constant 0 : index
    %8 = vector.load %arg1[%c0_9, %c0_10] : memref<8x1xf32, #tpu.memory_space<vmem>>, vector<8x1xf32>
    %9 = vector.broadcast %8 : vector<8x1xf32> to vector<8x128xf32>
    %10 = vector.broadcast %0 : vector<1x128xf32> to vector<8x128xf32>
    %11 = arith.mulf %9, %10 : vector<8x128xf32>
    %12 = vector.broadcast %1 : vector<1x128xf32> to vector<8x128xf32>
    %13 = arith.addf %11, %12 : vector<8x128xf32>
    %cst = arith.constant 0.000000e+00 : f32
    %14 = vector.broadcast %cst : f32 to vector<8x128xf32>
    %15 = arith.maximumf %13, %14 : vector<8x128xf32>
    %16 = arith.truncf %15 : vector<8x128xf32> to vector<8x128xbf16>
    %cst_11 = arith.constant dense<0.000000e+00> : vector<8x128xf32>
    %17 = tpu.matmul %16, %5, %cst_11 {dimension_numbers = #tpu.dot_dimension_numbers<[1], [0], [0], [1], [0, 0, 1, 1], [], []>} : vector<8x128xbf16>, vector<128x128xbf16>, vector<8x128xf32> -> vector<8x128xf32>
    %18 = vector.broadcast %2 : vector<1x128xf32> to vector<8x128xf32>
    %19 = arith.addf %17, %18 : vector<8x128xf32>
    %cst_12 = arith.constant 0.000000e+00 : f32
    %20 = vector.broadcast %cst_12 : f32 to vector<8x128xf32>
    %21 = arith.maximumf %19, %20 : vector<8x128xf32>
    %22 = arith.truncf %21 : vector<8x128xf32> to vector<8x128xbf16>
    %cst_13 = arith.constant dense<0.000000e+00> : vector<8x128xf32>
    %23 = tpu.matmul %22, %6, %cst_13 {dimension_numbers = #tpu.dot_dimension_numbers<[1], [0], [0], [1], [0, 0, 1, 1], [], []>} : vector<8x128xbf16>, vector<128x128xbf16>, vector<8x128xf32> -> vector<8x128xf32>
    %24 = vector.broadcast %3 : vector<1x128xf32> to vector<8x128xf32>
    %25 = arith.addf %23, %24 : vector<8x128xf32>
    %cst_14 = arith.constant 0.000000e+00 : f32
    %26 = vector.broadcast %cst_14 : f32 to vector<8x128xf32>
    %27 = arith.maximumf %25, %26 : vector<8x128xf32>
    %28 = arith.truncf %27 : vector<8x128xf32> to vector<8x128xbf16>
    %cst_15 = arith.constant dense<0.000000e+00> : vector<8x128xf32>
    %29 = tpu.matmul %28, %7, %cst_15 {dimension_numbers = #tpu.dot_dimension_numbers<[1], [0], [0], [1], [0, 0, 1, 1], [], []>} : vector<8x128xbf16>, vector<128x128xbf16>, vector<8x128xf32> -> vector<8x128xf32>
    %30 = vector.broadcast %4 : vector<1x128xf32> to vector<8x128xf32>
    %31 = arith.addf %29, %30 : vector<8x128xf32>
    %32 = tpu.iota {dimensions = array<i32: 1>} : vector<8x128xi32>
    %c32_i32 = arith.constant 32 : i32
    %33 = vector.broadcast %c32_i32 : i32 to vector<8x128xi32>
    %34 = arith.cmpi sge, %32, %33 : vector<8x128xi32>
    %c48_i32 = arith.constant 48 : i32
    %35 = vector.broadcast %c48_i32 : i32 to vector<8x128xi32>
    %36 = arith.cmpi slt, %32, %35 : vector<8x128xi32>
    %37 = arith.andi %34, %36 : vector<8x128xi1>
    %cst_16 = arith.constant 0xFF800000 : f32
    %38 = vector.broadcast %cst_16 : f32 to vector<8x128xf32>
    %39 = arith.select %37, %31, %38 : vector<8x128xi1>, vector<8x128xf32>
    %cst_17 = arith.constant dense<0xFF800000> : vector<8xf32>
    %40 = vector.multi_reduction <maximumf>, %39, %cst_17 [1] : vector<8x128xf32> to vector<8xf32>
    %41 = vector.shape_cast %40 : vector<8xf32> to vector<8x1xf32>
    %42 = vector.broadcast %41 : vector<8x1xf32> to vector<8x128xf32>
    %43 = arith.subf %39, %42 : vector<8x128xf32>
    %44 = math.exp %43 : vector<8x128xf32>
    %cst_18 = arith.constant dense<0.000000e+00> : vector<8xf32>
    %45 = vector.multi_reduction <add>, %44, %cst_18 [1] : vector<8x128xf32> to vector<8xf32>
    %46 = vector.shape_cast %45 : vector<8xf32> to vector<8x1xf32>
    %47 = vector.broadcast %46 : vector<8x1xf32> to vector<8x128xf32>
    %48 = arith.divf %44, %47 : vector<8x128xf32>
    %49 = arith.select %37, %48, %31 : vector<8x128xi1>, vector<8x128xf32>
    %c0_19 = arith.constant 0 : index
    %c0_20 = arith.constant 0 : index
    %50 = vector.load %arg4[%c0_19, %c0_20] : memref<8x128xf32, #tpu.memory_space<vmem>>, vector<8x128xf32>
    tpu.vector_store %arg4[%c0_19, %c0_20], %49 {strides = array<i32>} : memref<8x128xf32, #tpu.memory_space<vmem>>, vector<8x128xf32>,
    return
  }
  func.func @transform_0(%arg0: i32) -> (i32, i32) {
    %c0_i32 = arith.constant 0 : i32
    %c0_i32_0 = arith.constant 0 : i32
    return %arg0, %c0_i32 : i32, i32
  }
  func.func @transform_1(%arg0: i32) -> (i32, i32) {
    %c0_i32 = arith.constant 0 : i32
    %c0_i32_0 = arith.constant 0 : i32
    %c0_i32_1 = arith.constant 0 : i32
    return %c0_i32, %c0_i32_0 : i32, i32
  }
  func.func @transform_2(%arg0: i32) -> (i32, i32) {
    %c0_i32 = arith.constant 0 : i32
    %c0_i32_0 = arith.constant 0 : i32
    %c0_i32_1 = arith.constant 0 : i32
    return %c0_i32, %c0_i32_0 : i32, i32
  }
  func.func @transform_3(%arg0: i32) -> (i32, i32) {
    %c0_i32 = arith.constant 0 : i32
    %c0_i32_0 = arith.constant 0 : i32
    return %arg0, %c0_i32 : i32, i32
  }
}

</mosaic_0001>

<llo_original>
// kernel: tpu_custom_call.1
$region0: #{tpu_custom_call.1}
  #allocation0 [shape = 'u32[]', space=smem, size = 0x4, offset = 0x4, fixed_abs, tag = 'smem constant byte address 0x4 - core index']
  #allocation1 [shape = 'u32[144,128]{1,0:T(1,128)}', space=vmem, size = 0x12000, scoped, tag = 'internal scratch']
  %s0 = inlined_call_operand.vmem [shape: f32[8,1], index: 0, kind: input, shape index: {}]
  %s1 = inlined_call_operand.vmem [shape: f32[8,128], index: 1, kind: input, shape index: {}]
  %s2 = inlined_call_operand.hbm [shape: bf16[384,128], index: 2, kind: input, shape index: {}]
  %s3 = inlined_call_operand.hbm [shape: f32[8,128], index: 3, kind: output, shape index: {}]
  %s4 = sld [smem:[#allocation0]]
  $region26: #{tpu_custom_call.1} parent=0
    _
  %s6 = ssub.s32 1, %s4
  %s7 = scalar_select 0, %s6, %s4
  $region1: #{tpu_custom_call.1} parent=0
    #allocation2 [shape = 'u8[98304]{0}', space=vmem, size = 0x18000, scoped, tag = 'input window, operand 2, single buffered']
    #allocation3 [shape = 's32[1]{0}', space=sflag, size = 0x4, scoped, tag = 'scoped memory for tpu_custom_call.1']
    #allocation4 [shape = 's32[1]{0}', space=sflag, size = 0x4, scoped, tag = 'scoped memory for tpu_custom_call.1']
    #allocation5 [shape = 'u8[4096]{0}', space=vmem, size = 0x1000, scoped, tag = 'output window, operand 0, single buffered']
    %8 = vsyncpa [#allocation3], 0
    %9 = vsyncpa [#allocation4], 0
    // Predicated region
    $region2: #{tpu_custom_call.1} parent=1 // pred_check
      _
    $region3: #{tpu_custom_call.1} parent=1 // pred_check_branch
      %11 = sbr.rel (0) target = $region5
    $region4: #{tpu_custom_call.1} parent=1 // pred_region
      _
    $region5: #{tpu_custom_call.1} parent=1 // pred_fallthru
      _
    // Predicated region
    $region6: #{tpu_custom_call.1} parent=1 // pred_check
      _
    $region7: #{tpu_custom_call.1} parent=1 // pred_check_branch
      %13 = sbr.rel (0) target = $region9
    $region8: #{tpu_custom_call.1} parent=1 // pred_region
      _
    $region9: #{tpu_custom_call.1} parent=1 // pred_fallthru
      _
    // Predicated region
    $region10: #{tpu_custom_call.1} parent=1 // pred_check
      _
    $region11: #{tpu_custom_call.1} parent=1 // pred_check_branch
      %15 = sbr.rel (0) target = $region13
    $region12: #{tpu_custom_call.1} parent=1 // pred_region
      %s17 = ssub.s32 3072, 3072
      %18 = vsyncadd [#allocation3], %s17
      %s19 = sshll.u32 [#allocation2], 4
      %s20 = int_to_ptr.vmem [resolvable:$true] %s19
      %25 = dma.hbm_to_vmem [thread:$0]  %s2, 3072, %s20, [#allocation3], 64, 64, 4
    $region13: #{tpu_custom_call.1} parent=1 // pred_fallthru
      _
    // Predicated region
    $region14: #{tpu_custom_call.1} parent=1 // pred_check
      _
    $region15: #{tpu_custom_call.1} parent=1 // pred_check_branch
      %27 = sbr.rel (0) target = $region17
    $region16: #{tpu_custom_call.1} parent=1 // pred_region
      %28 = dma.done [#allocation3], 3072
    $region17: #{tpu_custom_call.1} parent=1 // pred_fallthru
      _
    %v30 = vld [vmem:[%s1] sm:$0x1]
    %v31 = vld [vmem:[%s1 + $0x1] sm:$0x1]
    %v32 = vld [vmem:[%s1 + $0x2] sm:$0x1]
    %v33 = vld [vmem:[%s1 + $0x3] sm:$0x1]
    %v34 = vld [vmem:[%s1 + $0x4] sm:$0x1]
    %v35 = vld [vmem:[#allocation2] sm:$0xf]
    %v36 = vld [vmem:[#allocation2 + $0x4] sm:$0xf]
    %v37 = vld [vmem:[#allocation2 + $0x8] sm:$0xf]
    %v38 = vld [vmem:[#allocation2 + $0xc] sm:$0xf]
    %v39 = vld [vmem:[#allocation2 + $0x10] sm:$0xf]
    %v40 = vld [vmem:[#allocation2 + $0x14] sm:$0xf]
    %v41 = vld [vmem:[#allocation2 + $0x18] sm:$0xf]
    %v42 = vld [vmem:[#allocation2 + $0x1c] sm:$0xf]
    %v43 = vld [vmem:[#allocation2 + $0x20] sm:$0xf]
    %v44 = vld [vmem:[#allocation2 + $0x24] sm:$0xf]
    %v45 = vld [vmem:[#allocation2 + $0x28] sm:$0xf]
    %v46 = vld [vmem:[#allocation2 + $0x2c] sm:$0xf]
    %v47 = vld [vmem:[#allocation2 + $0x30] sm:$0xf]
    %v48 = vld [vmem:[#allocation2 + $0x34] sm:$0xf]
    %v49 = vld [vmem:[#allocation2 + $0x38] sm:$0xf]
    %v50 = vld [vmem:[#allocation2 + $0x3c] sm:$0xf]
    %v51 = vld [vmem:[#allocation2 + $0x40] sm:$0xf]
    %v52 = vld [vmem:[#allocation2 + $0x44] sm:$0xf]
    %v53 = vld [vmem:[#allocation2 + $0x48] sm:$0xf]
    %v54 = vld [vmem:[#allocation2 + $0x4c] sm:$0xf]
    %v55 = vld [vmem:[#allocation2 + $0x50] sm:$0xf]
    %v56 = vld [vmem:[#allocation2 + $0x54] sm:$0xf]
    %v57 = vld [vmem:[#allocation2 + $0x58] sm:$0xf]
    %v58 = vld [vmem:[#allocation2 + $0x5c] sm:$0xf]
    %v59 = vld [vmem:[#allocation2 + $0x60] sm:$0xf]
    %v60 = vld [vmem:[#allocation2 + $0x64] sm:$0xf]
    %v61 = vld [vmem:[#allocation2 + $0x68] sm:$0xf]
    %v62 = vld [vmem:[#allocation2 + $0x6c] sm:$0xf]
    %v63 = vld [vmem:[#allocation2 + $0x70] sm:$0xf]
    %v64 = vld [vmem:[#allocation2 + $0x74] sm:$0xf]
    %v65 = vld [vmem:[#allocation2 + $0x78] sm:$0xf]
    %v66 = vld [vmem:[#allocation2 + $0x7c] sm:$0xf]
    %v67 = vld [vmem:[#allocation2 + $0x80] sm:$0xf]
    %v68 = vld [vmem:[#allocation2 + $0x84] sm:$0xf]
    %v69 = vld [vmem:[#allocation2 + $0x88] sm:$0xf]
    %v70 = vld [vmem:[#allocation2 + $0x8c] sm:$0xf]
    %v71 = vld [vmem:[#allocation2 + $0x90] sm:$0xf]
    %v72 = vld [vmem:[#allocation2 + $0x94] sm:$0xf]
    %v73 = vld [vmem:[#allocation2 + $0x98] sm:$0xf]
    %v74 = vld [vmem:[#allocation2 + $0x9c] sm:$0xf]
    %v75 = vld [vmem:[#allocation2 + $0xa0] sm:$0xf]
    %v76 = vld [vmem:[#allocation2 + $0xa4] sm:$0xf]
    %v77 = vld [vmem:[#allocation2 + $0xa8] sm:$0xf]
    %v78 = vld [vmem:[#allocation2 + $0xac] sm:$0xf]
    %v79 = vld [vmem:[#allocation2 + $0xb0] sm:$0xf]
    %v80 = vld [vmem:[#allocation2 + $0xb4] sm:$0xf]
    %v81 = vld [vmem:[#allocation2 + $0xb8] sm:$0xf]
    %v82 = vld [vmem:[#allocation2 + $0xbc] sm:$0xf]
    %v83 = vld [vmem:[%s0] sm:$0xff]
    %85 = vset.pattern.permute.xlu0 0
    %86 = vperm.xlu0 %85, %v83
    %v87 = vpop.permute.xlu0 %86
    %v89 = vlaneseq
    %v90 = vshrl.u32 %v89, 7
    %v91 = vsub.s32 0, %v90
    %v92 = vrot.slane %v30, %v91
    %v93 = vmul.f32 %v87, %v92
    %v94 = vlaneseq
    %v95 = vshrl.u32 %v94, 7
    %v96 = vsub.s32 0, %v95
    %v97 = vrot.slane %v31, %v96
    %v98 = vadd.f32 %v93, %v97
    %v99 = vmax.f32 %v98, 0.0
    %v100 = vpack.c.bf16 %v99, %v99
    %v101 = vlaneseq
    %v102 = vshrl.u32 %v101, 7
    %v103 = vsub.s32 0, %v102
    %v104 = vrot.slane %v32, %v103
    %v121 = vunpack.c.l.b16 %v35
    %v122 = vunpack.c.l.b16 %v36
    %v123 = vunpack.c.l.b16 %v37
    %v124 = vunpack.c.l.b16 %v38
    %v125 = vunpack.c.l.b16 %v39
    %v126 = vunpack.c.l.b16 %v40
    %v127 = vunpack.c.l.b16 %v41
    %v128 = vunpack.c.l.b16 %v42
    %v129 = vunpack.c.l.b16 %v43
    %v130 = vunpack.c.l.b16 %v44
    %v131 = vunpack.c.l.b16 %v45
    %v132 = vunpack.c.l.b16 %v46
    %v133 = vunpack.c.l.b16 %v47
    %v134 = vunpack.c.l.b16 %v48
    %v135 = vunpack.c.l.b16 %v49
    %v136 = vunpack.c.l.b16 %v50
    %v137 = vpack.c.b16 %v122, %v121
    %v138 = vpack.c.b16 %v124, %v123
    %v139 = vpack.c.b16 %v126, %v125
    %v140 = vpack.c.b16 %v128, %v127
    %v141 = vpack.c.b16 %v130, %v129
    %v142 = vpack.c.b16 %v132, %v131
    %v143 = vpack.c.b16 %v134, %v133
    %v144 = vpack.c.b16 %v136, %v135
    %153 = vmatprep.subr.bf16.mxu0 0
    %154 = vmatpush1.bf16.msra.mxu0 %v144
    %155 = vmatprep.subr.bf16.mxu0 0
    %156 = vmatpush1.bf16.msra.mxu0 %v143
    %157 = vmatprep.subr.bf16.mxu0 0
    %158 = vmatpush1.bf16.msra.mxu0 %v142
    %159 = vmatprep.subr.bf16.mxu0 0
    %160 = vmatpush1.bf16.msra.mxu0 %v141
    %161 = vmatprep.subr.bf16.mxu0 0
    %162 = vmatpush1.bf16.msra.mxu0 %v140
    %163 = vmatprep.subr.bf16.mxu0 0
    %164 = vmatpush1.bf16.msra.mxu0 %v139
    %165 = vmatprep.subr.bf16.mxu0 0
    %166 = vmatpush1.bf16.msra.mxu0 %v138
    %167 = vmatprep.subr.bf16.mxu0 0
    %168 = vmatpush1.bf16.msra.mxu0 %v137
    %169 = vmatprep.subr.bf16.mxu0 0
    %170 = vmatpush2.bf16.msra.mxu0 0
    %171 = vmatprep.subr.bf16.mxu0 0
    %172 = vmatpush2.bf16.msra.mxu0 0
    %173 = vmatprep.subr.bf16.mxu0 0
    %174 = vmatpush2.bf16.msra.mxu0 0
    %175 = vmatprep.subr.bf16.mxu0 0
    %176 = vmatpush2.bf16.msra.mxu0 0
    %177 = vmatprep.subr.bf16.mxu0 0
    %178 = vmatpush2.bf16.msra.mxu0 0
    %179 = vmatprep.subr.bf16.mxu0 0
    %180 = vmatpush2.bf16.msra.mxu0 0
    %181 = vmatprep.subr.bf16.mxu0 0
    %182 = vmatpush2.bf16.msra.mxu0 0
    %183 = vmatprep.subr.bf16.mxu0 0
    %184 = vmatpush2.bf16.msra.mxu0 0
    %185 = vmatprep.mubr.bf16.mxu0 0
    %186 = vmatmul.mubr.bf16.gmra.mxu0 %v100
    %v187 = vpop.f32.mrf.mxu0
    %v188 = vadd.f32 %v104, %v187
    %v189 = vpop.f32.mrf.mxu0
    %v190 = vpop.f32.mrf.mxu0
    %v191 = vpop.f32.mrf.mxu0
    %192 = vdwg.mxu0
    %v193 = vmax.f32 %v188, 0.0
    %v194 = vpack.c.bf16 %v193, %v193
    %v195 = vlaneseq
    %v196 = vshrl.u32 %v195, 7
    %v197 = vsub.s32 0, %v196
    %v198 = vrot.slane %v33, %v197
    %v215 = vunpack.c.l.b16 %v51
    %v216 = vunpack.c.l.b16 %v52
    %v217 = vunpack.c.l.b16 %v53
    %v218 = vunpack.c.l.b16 %v54
    %v219 = vunpack.c.l.b16 %v55
    %v220 = vunpack.c.l.b16 %v56
    %v221 = vunpack.c.l.b16 %v57
    %v222 = vunpack.c.l.b16 %v58
    %v223 = vunpack.c.l.b16 %v59
    %v224 = vunpack.c.l.b16 %v60
    %v225 = vunpack.c.l.b16 %v61
    %v226 = vunpack.c.l.b16 %v62
    %v227 = vunpack.c.l.b16 %v63
    %v228 = vunpack.c.l.b16 %v64
    %v229 = vunpack.c.l.b16 %v65
    %v230 = vunpack.c.l.b16 %v66
    %v231 = vpack.c.b16 %v216, %v215
    %v232 = vpack.c.b16 %v218, %v217
    %v233 = vpack.c.b16 %v220, %v219
    %v234 = vpack.c.b16 %v222, %v221
    %v235 = vpack.c.b16 %v224, %v223
    %v236 = vpack.c.b16 %v226, %v225
    %v237 = vpack.c.b16 %v228, %v227
    %v238 = vpack.c.b16 %v230, %v229
    %247 = vmatprep.subr.bf16.mxu0 0
    %248 = vmatpush1.bf16.msra.mxu0 %v238
    %249 = vmatprep.subr.bf16.mxu0 0
    %250 = vmatpush1.bf16.msra.mxu0 %v237
    %251 = vmatprep.subr.bf16.mxu0 0
    %252 = vmatpush1.bf16.msra.mxu0 %v236
    %253 = vmatprep.subr.bf16.mxu0 0
    %254 = vmatpush1.bf16.msra.mxu0 %v235
    %255 = vmatprep.subr.bf16.mxu0 0
    %256 = vmatpush1.bf16.msra.mxu0 %v234
    %257 = vmatprep.subr.bf16.mxu0 0
    %258 = vmatpush1.bf16.msra.mxu0 %v233
    %259 = vmatprep.subr.bf16.mxu0 0
    %260 = vmatpush1.bf16.msra.mxu0 %v232
    %261 = vmatprep.subr.bf16.mxu0 0
    %262 = vmatpush1.bf16.msra.mxu0 %v231
    %263 = vmatprep.subr.bf16.mxu0 0
    %264 = vmatpush2.bf16.msra.mxu0 0
    %265 = vmatprep.subr.bf16.mxu0 0
    %266 = vmatpush2.bf16.msra.mxu0 0
    %267 = vmatprep.subr.bf16.mxu0 0
    %268 = vmatpush2.bf16.msra.mxu0 0
    %269 = vmatprep.subr.bf16.mxu0 0
    %270 = vmatpush2.bf16.msra.mxu0 0
    %271 = vmatprep.subr.bf16.mxu0 0
    %272 = vmatpush2.bf16.msra.mxu0 0
    %273 = vmatprep.subr.bf16.mxu0 0
    %274 = vmatpush2.bf16.msra.mxu0 0
    %275 = vmatprep.subr.bf16.mxu0 0
    %276 = vmatpush2.bf16.msra.mxu0 0
    %277 = vmatprep.subr.bf16.mxu0 0
    %278 = vmatpush2.bf16.msra.mxu0 0
    %279 = vmatprep.mubr.bf16.mxu0 0
    %280 = vmatmul.mubr.bf16.gmra.mxu0 %v194
    %v281 = vpop.f32.mrf.mxu0
    %v282 = vadd.f32 %v198, %v281
    %v283 = vpop.f32.mrf.mxu0
    %v284 = vpop.f32.mrf.mxu0
    %v285 = vpop.f32.mrf.mxu0
    %286 = vdwg.mxu0
    %v287 = vmax.f32 %v282, 0.0
    %v288 = vpack.c.bf16 %v287, %v287
    %v289 = vlaneseq
    %v290 = vshrl.u32 %v289, 7
    %v291 = vsub.s32 0, %v290
    %v292 = vrot.slane %v34, %v291
    %v309 = vunpack.c.l.b16 %v67
    %v310 = vunpack.c.l.b16 %v68
    %v311 = vunpack.c.l.b16 %v69
    %v312 = vunpack.c.l.b16 %v70
    %v313 = vunpack.c.l.b16 %v71
    %v314 = vunpack.c.l.b16 %v72
    %v315 = vunpack.c.l.b16 %v73
    %v316 = vunpack.c.l.b16 %v74
    %v317 = vunpack.c.l.b16 %v75
    %v318 = vunpack.c.l.b16 %v76
    %v319 = vunpack.c.l.b16 %v77
    %v320 = vunpack.c.l.b16 %v78
    %v321 = vunpack.c.l.b16 %v79
    %v322 = vunpack.c.l.b16 %v80
    %v323 = vunpack.c.l.b16 %v81
    %v324 = vunpack.c.l.b16 %v82
    %v325 = vpack.c.b16 %v310, %v309
    %v326 = vpack.c.b16 %v312, %v311
    %v327 = vpack.c.b16 %v314, %v313
    %v328 = vpack.c.b16 %v316, %v315
    %v329 = vpack.c.b16 %v318, %v317
    %v330 = vpack.c.b16 %v320, %v319
    %v331 = vpack.c.b16 %v322, %v321
    %v332 = vpack.c.b16 %v324, %v323
    %341 = vmatprep.subr.bf16.mxu0 0
    %342 = vmatpush1.bf16.msra.mxu0 %v332
    %343 = vmatprep.subr.bf16.mxu0 0
    %344 = vmatpush1.bf16.msra.mxu0 %v331
    %345 = vmatprep.subr.bf16.mxu0 0
    %346 = vmatpush1.bf16.msra.mxu0 %v330
    %347 = vmatprep.subr.bf16.mxu0 0
    %348 = vmatpush1.bf16.msra.mxu0 %v329
    %349 = vmatprep.subr.bf16.mxu0 0
    %350 = vmatpush1.bf16.msra.mxu0 %v328
    %351 = vmatprep.subr.bf16.mxu0 0
    %352 = vmatpush1.bf16.msra.mxu0 %v327
    %353 = vmatprep.subr.bf16.mxu0 0
    %354 = vmatpush1.bf16.msra.mxu0 %v326
    %355 = vmatprep.subr.bf16.mxu0 0
    %356 = vmatpush1.bf16.msra.mxu0 %v325
    %357 = vmatprep.subr.bf16.mxu0 0
    %358 = vmatpush2.bf16.msra.mxu0 0
    %359 = vmatprep.subr.bf16.mxu0 0
    %360 = vmatpush2.bf16.msra.mxu0 0
    %361 = vmatprep.subr.bf16.mxu0 0
    %362 = vmatpush2.bf16.msra.mxu0 0
    %363 = vmatprep.subr.bf16.mxu0 0
    %364 = vmatpush2.bf16.msra.mxu0 0
    %365 = vmatprep.subr.bf16.mxu0 0
    %366 = vmatpush2.bf16.msra.mxu0 0
    %367 = vmatprep.subr.bf16.mxu0 0
    %368 = vmatpush2.bf16.msra.mxu0 0
    %369 = vmatprep.subr.bf16.mxu0 0
    %370 = vmatpush2.bf16.msra.mxu0 0
    %371 = vmatprep.subr.bf16.mxu0 0
    %372 = vmatpush2.bf16.msra.mxu0 0
    %373 = vmatprep.mubr.bf16.mxu0 0
    %374 = vmatmul.mubr.bf16.gmra.mxu0 %v288
    %v375 = vpop.f32.mrf.mxu0
    %v376 = vadd.f32 %v292, %v375
    %v377 = vpop.f32.mrf.mxu0
    %v378 = vpop.f32.mrf.mxu0
    %v379 = vpop.f32.mrf.mxu0
    %380 = vdwg.mxu0
    %v381 = vlaneseq
    %v382 = vand.u32 %v381, 127
    %vm383 = vcmp.ge.s32.totalorder %v382, 32
    %vm384 = vcmp.lt.s32.totalorder %v382, 48
    %vm385 = vmand %vm383, %vm384
    %v386 = vsel %vm385, %v376, -inf
    %387 = vmax.xlane.f32.xlu0 %v386
    %v388 = vpop.xlane.xlu0 %387
    %v389 = vsub.f32 %v386, %v388
    %v390 = vmul.f32 %v389, 1.442695
    %v391 = vpow.pop %v390
    %392 = vadd.xlane.f32.xlu0 %v391
    %v393 = vpop.xlane.xlu0 %392
    %v394 = vrcp.pop %v393
    %v395 = vmul.f32 %v391, %v394
    %v396 = vsel %vm385, %v395, %v376
    %397 = vst [vmem:[#allocation5] sm:$0xff] %v396
    // Predicated region
    $region18: #{tpu_custom_call.1} parent=1 // pred_check
      _
    $region19: #{tpu_custom_call.1} parent=1 // pred_check_branch
      %399 = sbr.rel (0) target = $region21
    $region20: #{tpu_custom_call.1} parent=1 // pred_region
      %s401 = ssub.s32 128, 128
      %402 = vsyncadd [#allocation4], %s401
      %s404 = sshll.u32 [#allocation5], 4
      %s405 = int_to_ptr.vmem [resolvable:$true] %s404
      %407 = dma.vmem_to_hbm [thread:$0]  %s405, 128, %s3, [#allocation4]
    $region21: #{tpu_custom_call.1} parent=1 // pred_fallthru
      _
    // Predicated region
    $region22: #{tpu_custom_call.1} parent=1 // pred_check
      _
    $region23: #{tpu_custom_call.1} parent=1 // pred_check_branch
      %409 = sbr.rel (0) target = $region25
    $region24: #{tpu_custom_call.1} parent=1 // pred_region
      %410 = dma.done [#allocation4], 128
    $region25: #{tpu_custom_call.1} parent=1 // pred_fallthru
      _
    %411 = vsyncpa [#allocation3], 1
    %412 = vsyncpa [#allocation4], 1

</llo_original>
